<compile_context>
chip_gen: v7x
topology: tpu7x:2x2x1
jax: 0.10.0
libtpu: 0.0.40
codegen_flags: <defaults>
</compile_context>

<pallas_src>
import functools

import numpy as np
import jax
import jax.numpy as jnp
from jax.experimental import pallas as pl
from jax.experimental.pallas import tpu as pltpu

# ----------------------------- hparams (fixed, deterministic) -----------------------------
HPARAMS = dict(
    sigma=1.0,
    diffusion_from_prior=True,
    spk_dropout=0.0,
    infer_style="default",
    noise_factor=1.0,
    hidden_size=32,
    vqemb_size=16,
)
BETA_MIN = 0.05
BETA_MAX = 20.0
SIGMA2 = HPARAMS["sigma"] ** 2
FROM_PRIOR = HPARAMS["diffusion_from_prior"]


# --------------------------- host-side coefficient folding --------------------------------
def _coef_table(n_timesteps):
    """Fold get_noise + cal_dxt + (xt - dxt) into xt_new = c_xt*xt + c_mu*mu + c_x0*x0_.

    Mirrors the reference math (including the asymmetric /sigma^2 placement in rho's
    mu-term and the 1e-8 epsilon in the logp denominator).  Folded in float32 so the
    per-step constants match the reference's f32 chain as closely as possible.
    Returned FLAT (4*n_timesteps,) so the SMEM copy doesn't pad to [R8, 128] words.
    """
    f32 = np.float32
    h = f32(1.0) / f32(n_timesteps)
    sig2 = f32(SIGMA2)
    rows = []
    for i in range(n_timesteps):
        t = f32(1.0) - (f32(i) + f32(0.5)) * h
        noise_t = f32(BETA_MIN) + f32(BETA_MAX - BETA_MIN) * t
        cum = f32(BETA_MIN) * t + f32(0.5) * f32(BETA_MAX - BETA_MIN) * t * t
        e1 = np.exp(f32(-0.5) * cum / sig2)   # multiplies x0_ in rho
        e2 = np.exp(f32(-0.5) * cum)          # reference's mu-term exp (no /sigma^2)
        lam = sig2 * (f32(1.0) - np.exp(-cum / sig2)) + f32(1e-8)
        a = f32(0.5) * noise_t * h
        c_xt = f32(1.0) + a / sig2 - a / lam
        if FROM_PRIOR:
            c_mu = a * ((f32(1.0) - e2 / sig2) / lam - f32(1.0) / sig2)
        else:
            c_mu = f32(0.0)
        c_x0 = a * e1 / lam
        rows.extend([f32(t), f32(c_xt), f32(c_mu), f32(c_x0)])
    return np.asarray(rows, dtype=np.float32)


# ----------------------------------- Pallas kernels ---------------------------------------
def fused_reverse_diffusion_kernel(coef_ref, z_ref, mu_ref, mask_ref,
                                   w1_ref, w2_ref, b_ref, out_ref, *, n_timesteps):
    """Whole reverse-diffusion chain for one lane tile; timestep loop is in-kernel.

    coef_ref : SMEM flat (4*n_timesteps,) rows of [t, c_xt, c_mu, c_x0]
    z/mu     : VMEM (F, tile_N) lane-dense tile
    mask     : VMEM (1, tile_N)
    w1/w2    : VMEM (F, F) estimator stand-in weights, b: (F, 1)
    """
    mu = mu_ref[...].astype(jnp.float32)
    w1 = w1_ref[...].astype(jnp.float32)
    b = b_ref[...].astype(jnp.float32)

    # W2 @ mu is timestep-invariant -> compute once, reuse across the whole loop.
    muproj = jnp.dot(w2_ref[...].astype(jnp.float32), mu,
                     preferred_element_type=jnp.float32)
    # Hoist the (1, N) -> (F, N) sublane broadcast of the mask out of the loop
    # (JAX does not CSE broadcast_in_dim).
    mask_f = jnp.broadcast_to(mask_ref[...].astype(jnp.float32), muproj.shape)

    xt0 = z_ref[...].astype(jnp.float32)

    def body(step, xt):
        t = coef_ref[4 * step + 0]
        c_xt = coef_ref[4 * step + 1]
        c_mu = coef_ref[4 * step + 2]
        c_x0 = coef_ref[4 * step + 3]

        # estimator stand-in: x0_ = tanh(W1 @ xt + W2 @ mu + b * t) * x_mask
        # TODO(synk): real estimator (WavNet / TransformerEstimator) is an external module.
        h = jnp.dot(w1, xt, preferred_element_type=jnp.float32)
        h = h + muproj + b * t
        x0_ = jnp.tanh(h) * mask_f

        # folded Euler step (cal_dxt followed by xt = xt - dxt), stoc=False
        return c_xt * xt + c_mu * mu + c_x0 * x0_

    xt = jax.lax.fori_loop(0, n_timesteps, body, xt0)
    out_ref[...] = xt.astype(out_ref.dtype)


def spk_mlp_kernel(x_ref, w1_ref, b1_ref, w2_ref, b2_ref, out_ref):
    """spk_mlp: Linear(H, 4H) -> Mish -> Linear(4H, vqemb). Numerically stable softplus.
    (Output width V=16 < 128 lanes -> masked stores; trivial at B=2.)"""
    x = x_ref[...]
    h = jnp.dot(x, w1_ref[...], preferred_element_type=jnp.float32) + b1_ref[...]
    sp = jnp.where(h > 20.0, h, jnp.log1p(jnp.exp(jnp.minimum(h, 20.0))))
    h = h * jnp.tanh(sp)  # Mish
    y = jnp.dot(h, w2_ref[...], preferred_element_type=jnp.float32) + b2_ref[...]
    out_ref[...] = y.astype(out_ref.dtype)


# ------------------------------------- wrappers --------------------------------------------
@functools.partial(jax.jit, static_argnames=("n_timesteps",))
def reverse_diffusion(z, x_mask, mu, n_timesteps, est_w1, est_w2, est_b):
    """Diffusion.forward with ref_x=None -> reverse_diffusion (stoc=False), fully fused."""
    B, F, T = z.shape
    N = B * T

    # Lane-dense layout: (B, F, T) -> (F, B*T).  For the small test case (B*T = 128) the
    # merge is what makes the lane dim a multiple of 128.  (At realistic T % 128 == 0 one
    # could keep 3-D (1, F, T) blocks with a parallel batch axis and skip these copies.)
    z2 = jnp.transpose(z, (1, 0, 2)).reshape(F, N)
    mu2 = jnp.transpose(mu, (1, 0, 2)).reshape(F, N)
    mask2 = jnp.transpose(x_mask, (1, 0, 2)).reshape(1, N)

    coefs = jnp.asarray(_coef_table(n_timesteps))   # flat (4*n_timesteps,) baked constant

    # Tile the lane axis: each tile runs its own full (independent) diffusion chain, so
    # the single grid axis is 'parallel' (shards across both TensorCores on v7x).
    if N % 128 == 0:
        tile_n = min(N, 2048)
        while N % tile_n:
            tile_n -= 128
    else:
        tile_n = N
    num_tiles = N // tile_n

    # VMEM budget: double-buffered (z, mu, mask, out) tiles + weights + headroom for the
    # compiler-managed live values (xt, muproj, mask_f, ...).  Stays inside the 16 MiB
    # (v5e) / 32 MiB (v6e, v7x) scoped defaults for small tiles, raised explicitly as
    # tiles grow.
    tile_bytes = F * tile_n * 4
    vmem_needed = 8 * tile_bytes + 2 * tile_n * 4 + (2 * F * F + F) * 4 + (2 << 20)
    vmem_limit = int(min(max(vmem_needed, 16 << 20), 100 << 20))

    kernel = functools.partial(fused_reverse_diffusion_kernel, n_timesteps=n_timesteps)

    out2 = pl.pallas_call(
        kernel,
        out_shape=jax.ShapeDtypeStruct((F, N), z.dtype),
        grid=(num_tiles,),
        in_specs=[
            pl.BlockSpec(memory_space=pltpu.MemorySpace.SMEM),   # coef table (flat 1-D)
            pl.BlockSpec((F, tile_n), lambda n: (0, n)),         # z
            pl.BlockSpec((F, tile_n), lambda n: (0, n)),         # mu
            pl.BlockSpec((1, tile_n), lambda n: (0, n)),         # x_mask
            pl.BlockSpec((F, F), lambda n: (0, 0)),              # est W1 (VMEM-resident)
            pl.BlockSpec((F, F), lambda n: (0, 0)),              # est W2
            pl.BlockSpec((F, 1), lambda n: (0, 0)),              # est b
        ],
        out_specs=pl.BlockSpec((F, tile_n), lambda n: (0, n)),
        compiler_params=pltpu.CompilerParams(
            dimension_semantics=("parallel",),
            vmem_limit_bytes=vmem_limit),
    )(coefs, z2, mu2, mask2, est_w1, est_w2, est_b)

    return out2.reshape(F, B, T).transpose(1, 0, 2)


@jax.jit
def spk_mlp(x, w1, b1, w2, b2):
    B, _ = x.shape
    V = w2.shape[1]
    return pl.pallas_call(
        spk_mlp_kernel,
        out_shape=jax.ShapeDtypeStruct((B, V), x.dtype),
    )(x, w1, b1, w2, b2)


# --------------------------- pure-JAX reference (unfused math) -----------------------------
def _reference_reverse_diffusion(z, x_mask, mu, n_timesteps, w1, w2, b):
    h = 1.0 / n_timesteps
    xt = z
    for i in range(n_timesteps):
        t = 1.0 - (i + 0.5) * h
        x0_ = jnp.tanh(jnp.einsum("ij,bjt->bit", w1, xt)
                       + jnp.einsum("ij,bjt->bit", w2, mu)
                       + b[None] * t) * x_mask
        noise_t = BETA_MIN + (BETA_MAX - BETA_MIN) * t
        cum = BETA_MIN * t + 0.5 * (BETA_MAX - BETA_MIN) * t * t
        if FROM_PRIOR:
            rho = x0_ * jnp.exp(-0.5 * cum / SIGMA2) + mu * (1.0 - jnp.exp(-0.5 * cum) / SIGMA2)
        else:
            rho = x0_ * jnp.exp(-0.5 * cum / SIGMA2)
        lam = SIGMA2 * (1.0 - jnp.exp(-cum / SIGMA2))
        logp = -(xt - rho) / (lam + 1e-8)
        if FROM_PRIOR:
            dxt = 0.5 * ((mu - xt) / SIGMA2 - logp)
        else:
            dxt = 0.5 * (-xt / SIGMA2 - logp)
        xt = xt - dxt * noise_t * h
    return xt


# --------------------------------------- main -----------------------------------------------
if __name__ == "__main__":
    key = jax.random.PRNGKey(0)
    B, F, T = 2, 16, 64            # batch, n_feats, time frames (B*T = 128 -> lane-dense)
    n_timesteps = 4
    H = HPARAMS["hidden_size"]
    V = HPARAMS["vqemb_size"]

    ks = jax.random.split(key, 10)
    z = jax.random.normal(ks[0], (B, F, T), dtype=jnp.float32)
    mu = jax.random.normal(ks[1], (B, F, T), dtype=jnp.float32)
    x_mask = jnp.ones((B, 1, T), dtype=jnp.float32)
    spk = jax.random.normal(ks[2], (B, H), dtype=jnp.float32)

    # deterministic parameter init (estimator stand-in + spk_mlp)
    est_w1 = 0.1 * jax.random.normal(ks[3], (F, F), dtype=jnp.float32)
    est_w2 = 0.1 * jax.random.normal(ks[4], (F, F), dtype=jnp.float32)
    est_b = 0.1 * jax.random.normal(ks[5], (F, 1), dtype=jnp.float32)

    mlp_w1 = 0.05 * jax.random.normal(ks[6], (H, 4 * H), dtype=jnp.float32)
    mlp_b1 = jnp.zeros((1, 4 * H), dtype=jnp.float32)
    mlp_w2 = 0.05 * jax.random.normal(ks[7], (4 * H, V), dtype=jnp.float32)
    mlp_b2 = jnp.zeros((1, V), dtype=jnp.float32)

    # spk_mlp is declared in Diffusion.__init__ (not used by reverse_diffusion); run it once.
    spk_emb = spk_mlp(spk, mlp_w1, mlp_b1, mlp_w2, mlp_b2)
    jax.block_until_ready(spk_emb)
    assert spk_emb.shape == (B, V)

    # Diffusion.forward(z, x_mask, mu, n_timesteps, spk=spk, stoc=False, ref_x=None)
    out = reverse_diffusion(z, x_mask, mu, n_timesteps, est_w1, est_w2, est_b)
    jax.block_until_ready(out)

    assert out.shape == (B, F, T) and out.dtype == jnp.float32

    ref = _reference_reverse_diffusion(z, x_mask, mu, n_timesteps, est_w1, est_w2, est_b)
    assert np.allclose(np.asarray(out), np.asarray(ref), rtol=2e-3, atol=2e-3), \
        "fused kernel diverges from unfused reference math"

    print("KERNEL_OK")
</pallas_src>

<mosaic_0001>
module attributes {stable_mosaic.version = 11 : i64} {
  func.func @spk_mlp_kernel(%arg0: memref<2x32xf32, #tpu.memory_space<vmem>>, %arg1: memref<32x128xf32, #tpu.memory_space<vmem>>, %arg2: memref<1x128xf32, #tpu.memory_space<vmem>>, %arg3: memref<128x16xf32, #tpu.memory_space<vmem>>, %arg4: memref<1x16xf32, #tpu.memory_space<vmem>>, %arg5: memref<2x16xf32, #tpu.memory_space<vmem>>) attributes {dimension_semantics = [], scalar_prefetch = 0 : i64, scratch_operands = 0 : i64, tpu.core_type = #tpu.core_type<tc>} {
    %c0 = arith.constant 0 : index
    %c0_0 = arith.constant 0 : index
    %0 = vector.load %arg0[%c0, %c0_0] : memref<2x32xf32, #tpu.memory_space<vmem>>, vector<2x32xf32>
    %c0_1 = arith.constant 0 : index
    %c0_2 = arith.constant 0 : index
    %1 = vector.load %arg1[%c0_1, %c0_2] : memref<32x128xf32, #tpu.memory_space<vmem>>, vector<32x128xf32>
    %cst = arith.constant dense<0.000000e+00> : vector<2x128xf32>
    %2 = tpu.matmul %0, %1, %cst {dimension_numbers = #tpu.dot_dimension_numbers<[1], [0], [0], [1], [0, 0, 1, 1], [], []>} : vector<2x32xf32>, vector<32x128xf32>, vector<2x128xf32> -> vector<2x128xf32>
    %c0_3 = arith.constant 0 : index
    %c0_4 = arith.constant 0 : index
    %3 = vector.load %arg2[%c0_3, %c0_4] : memref<1x128xf32, #tpu.memory_space<vmem>>, vector<1x128xf32>
    %4 = vector.broadcast %3 : vector<1x128xf32> to vector<2x128xf32>
    %5 = arith.addf %2, %4 : vector<2x128xf32>
    %cst_5 = arith.constant 2.000000e+01 : f32
    %6 = vector.broadcast %cst_5 : f32 to vector<2x128xf32>
    %7 = arith.cmpf ogt, %5, %6 : vector<2x128xf32>
    %cst_6 = arith.constant 2.000000e+01 : f32
    %8 = vector.broadcast %cst_6 : f32 to vector<2x128xf32>
    %9 = arith.minimumf %5, %8 : vector<2x128xf32>
    %10 = math.exp %9 : vector<2x128xf32>
    %11 = math.log1p %10 : vector<2x128xf32>
    %12 = arith.select %7, %5, %11 : vector<2x128xi1>, vector<2x128xf32>
    %13 = math.tanh %12 : vector<2x128xf32>
    %14 = arith.mulf %5, %13 : vector<2x128xf32>
    %c0_7 = arith.constant 0 : index
    %c0_8 = arith.constant 0 : index
    %15 = vector.load %arg3[%c0_7, %c0_8] : memref<128x16xf32, #tpu.memory_space<vmem>>, vector<128x16xf32>
    %cst_9 = arith.constant dense<0.000000e+00> : vector<2x16xf32>
    %16 = tpu.matmul %14, %15, %cst_9 {dimension_numbers = #tpu.dot_dimension_numbers<[1], [0], [0], [1], [0, 0, 1, 1], [], []>} : vector<2x128xf32>, vector<128x16xf32>, vector<2x16xf32> -> vector<2x16xf32>
    %c0_10 = arith.constant 0 : index
    %c0_11 = arith.constant 0 : index
    %17 = vector.load %arg4[%c0_10, %c0_11] : memref<1x16xf32, #tpu.memory_space<vmem>>, vector<1x16xf32>
    %18 = vector.broadcast %17 : vector<1x16xf32> to vector<2x16xf32>
    %19 = arith.addf %16, %18 : vector<2x16xf32>
    %c0_12 = arith.constant 0 : index
    %c0_13 = arith.constant 0 : index
    %20 = vector.load %arg5[%c0_12, %c0_13] : memref<2x16xf32, #tpu.memory_space<vmem>>, vector<2x16xf32>
    tpu.vector_store %arg5[%c0_12, %c0_13], %19 {strides = array<i32>} : memref<2x16xf32, #tpu.memory_space<vmem>>, vector<2x16xf32>,
    return
  }
}

</mosaic_0001>

<llo_original>
// kernel: spk_mlp.1
$region0: #{spk_mlp.1}
  #allocation0 [shape = 'u32[]', space=smem, size = 0x4, offset = 0x4, fixed_abs, tag = 'smem constant byte address 0x4 - core index']
  #allocation1 [shape = 'u32[144,128]{1,0:T(1,128)}', space=vmem, size = 0x12000, scoped, tag = 'internal scratch']
  %s0 = inlined_call_operand.vmem [shape: f32[2,32], index: 0, kind: input, shape index: {}]
  %s1 = inlined_call_operand.vmem [shape: f32[32,128], index: 1, kind: input, shape index: {}]
  %s2 = inlined_call_operand.vmem [shape: f32[1,128], index: 2, kind: input, shape index: {}]
  %s3 = inlined_call_operand.vmem [shape: f32[128,16], index: 3, kind: input, shape index: {}]
  %s4 = inlined_call_operand.vmem [shape: f32[1,16], index: 4, kind: input, shape index: {}]
  %s5 = inlined_call_operand.hbm [shape: f32[2,16], index: 5, kind: output, shape index: {}]
  %s6 = sld [smem:[#allocation0]]
  $region30: #{spk_mlp.1} parent=0
    _
  %s8 = ssub.s32 1, %s6
  %s9 = scalar_select 0, %s8, %s6
  $region1: #{spk_mlp.1} parent=0
    #allocation2 [shape = 'u8[1024]{0}', space=vmem, size = 0x400, scoped, tag = 'output window, operand 0, single buffered']
    #allocation3 [shape = 's32[1]{0}', space=sflag, size = 0x4, scoped, tag = 'scoped memory for spk_mlp.1']
    %10 = vsyncpa [#allocation3], 0
    // Predicated region
    $region2: #{spk_mlp.1} parent=1 // pred_check
      _
    $region3: #{spk_mlp.1} parent=1 // pred_check_branch
      %12 = sbr.rel (0) target = $region5
    $region4: #{spk_mlp.1} parent=1 // pred_region
      _
    $region5: #{spk_mlp.1} parent=1 // pred_fallthru
      _
    // Predicated region
    $region6: #{spk_mlp.1} parent=1 // pred_check
      _
    $region7: #{spk_mlp.1} parent=1 // pred_check_branch
      %14 = sbr.rel (0) target = $region9
    $region8: #{spk_mlp.1} parent=1 // pred_region
      _
    $region9: #{spk_mlp.1} parent=1 // pred_fallthru
      _
    // Predicated region
    $region10: #{spk_mlp.1} parent=1 // pred_check
      _
    $region11: #{spk_mlp.1} parent=1 // pred_check_branch
      %16 = sbr.rel (0) target = $region13
    $region12: #{spk_mlp.1} parent=1 // pred_region
      _
    $region13: #{spk_mlp.1} parent=1 // pred_fallthru
      _
    // Predicated region
    $region14: #{spk_mlp.1} parent=1 // pred_check
      _
    $region15: #{spk_mlp.1} parent=1 // pred_check_branch
      %18 = sbr.rel (0) target = $region17
    $region16: #{spk_mlp.1} parent=1 // pred_region
      _
    $region17: #{spk_mlp.1} parent=1 // pred_fallthru
      _
    // Predicated region
    $region18: #{spk_mlp.1} parent=1 // pred_check
      _
    $region19: #{spk_mlp.1} parent=1 // pred_check_branch
      %20 = sbr.rel (0) target = $region21
    $region20: #{spk_mlp.1} parent=1 // pred_region
      _
    $region21: #{spk_mlp.1} parent=1 // pred_fallthru
      _
    %v21 = vld [vmem:[%s0] sm:$0x3]
    %v22 = vld [vmem:[%s1] sm:$0xff]
    %v23 = vld [vmem:[%s1 + $0x8] sm:$0xff]
    %v24 = vld [vmem:[%s1 + $0x10] sm:$0xff]
    %v25 = vld [vmem:[%s1 + $0x18] sm:$0xff]
    %v26 = vld [vmem:[%s2] sm:$0x1]
    %v28 = vlaneseq
    %v29 = vshrl.u32 %v28, 7
    %v30 = vsub.s32 0, %v29
    %v31 = vrot.slane %v26, %v30
    %vm33 = vcmask 261120
    %v35 = vsel %vm33, %v21, 0
    %37 = vmatprep.subr.mxu0 0.0
    %38 = vmatpush1.msra.mxu0 %v22
    %39 = vmatprep.subr.mxu0 0.0
    %40 = vmatpush1.msra.mxu0 %v23
    %41 = vmatprep.subr.mxu0 0.0
    %42 = vmatpush1.msra.mxu0 %v24
    %43 = vmatprep.subr.mxu0 0.0
    %44 = vmatpush1.msra.mxu0 %v25
    %45 = vmatprep.subr.mxu0 0.0
    %46 = vmatpush1.msra.mxu0 0.0
    %47 = vmatprep.subr.mxu0 0.0
    %48 = vmatpush1.msra.mxu0 0.0
    %49 = vmatprep.subr.mxu0 0.0
    %50 = vmatpush1.msra.mxu0 0.0
    %51 = vmatprep.subr.mxu0 0.0
    %52 = vmatpush1.msra.mxu0 0.0
    %53 = vmatprep.subr.mxu0 0.0
    %54 = vmatpush1.msra.mxu0 0.0
    %55 = vmatprep.subr.mxu0 0.0
    %56 = vmatpush1.msra.mxu0 0.0
    %57 = vmatprep.subr.mxu0 0.0
    %58 = vmatpush1.msra.mxu0 0.0
    %59 = vmatprep.subr.mxu0 0.0
    %60 = vmatpush1.msra.mxu0 0.0
    %61 = vmatprep.subr.mxu0 0.0
    %62 = vmatpush1.msra.mxu0 0.0
    %63 = vmatprep.subr.mxu0 0.0
    %64 = vmatpush1.msra.mxu0 0.0
    %65 = vmatprep.subr.mxu0 0.0
    %66 = vmatpush1.msra.mxu0 0.0
    %67 = vmatprep.subr.mxu0 0.0
    %68 = vmatpush1.msra.mxu0 0.0
    %69 = vmatprep.subr.mxu0 0.0
    %70 = vmatpush1.msra.mxu0 0.0
    %71 = vmatprep.subr.mxu0 0.0
    %72 = vmatpush1.msra.mxu0 0.0
    %73 = vmatprep.subr.mxu0 0.0
    %74 = vmatpush1.msra.mxu0 0.0
    %75 = vmatprep.subr.mxu0 0.0
    %76 = vmatpush1.msra.mxu0 0.0
    %77 = vmatprep.subr.mxu0 0.0
    %78 = vmatpush1.msra.mxu0 0.0
    %79 = vmatprep.subr.mxu0 0.0
    %80 = vmatpush1.msra.mxu0 0.0
    %81 = vmatprep.subr.mxu0 0.0
    %82 = vmatpush1.msra.mxu0 0.0
    %83 = vmatprep.subr.mxu0 0.0
    %84 = vmatpush1.msra.mxu0 0.0
    %85 = vmatprep.subr.mxu0 0.0
    %86 = vmatpush1.msra.mxu0 0.0
    %87 = vmatprep.subr.mxu0 0.0
    %88 = vmatpush1.msra.mxu0 0.0
    %89 = vmatprep.subr.mxu0 0.0
    %90 = vmatpush1.msra.mxu0 0.0
    %91 = vmatprep.subr.mxu0 0.0
    %92 = vmatpush1.msra.mxu0 0.0
    %93 = vmatprep.subr.mxu0 0.0
    %94 = vmatpush1.msra.mxu0 0.0
    %95 = vmatprep.subr.mxu0 0.0
    %96 = vmatpush1.msra.mxu0 0.0
    %97 = vmatprep.subr.mxu0 0.0
    %98 = vmatpush1.msra.mxu0 0.0
    %99 = vmatprep.subr.mxu0 0.0
    %100 = vmatpush1.msra.mxu0 0.0
    %101 = vmatprep.mubr.f32.mxu0 0.0
    %102 = vmatmul.mubr.f32.gmra.mrb[0].mxu0 %v35
    %v103 = vpop.f32.mrb[0].mxu0
    %v104 = vadd.f32 %v31, %v103
    %v105 = vpop.f32.mrb[0].mxu0
    %106 = vdwg.mxu0
    %vm107 = vcmp.gt.f32.partialorder %v104, 20.0
    %v108 = vmin.f32 %v104, 20.0
    %v109 = vmul.f32 %v108, 1.442695
    %v110 = vpow.pop %v109
    %v111 = vadd.f32 %v110, 1.0
    %v112 = vlog2.pop %v111
    %v113 = vmul.f32 %v112, 0.6931472
    %v114 = vmul.f32 -0.5, %v110
    %v115 = vadd.f32 %v114, 1.0
    %v116 = vmul.f32 %v115, %v110
    %v117 = vand.u32 2147483647, %v110
    %vm118 = vcmp.lt.f32.partialorder %v117, 0.0004427343
    %v119 = vsel %vm118, %v116, %v113
    %v120 = vsel %vm107, %v104, %v119
    %v121 = vtanh.pop %v120
    %v122 = vmul.f32 %v104, %v121
    %v123 = vld [vmem:[%s3] sm:$0xff]
    %v124 = vld [vmem:[%s3 + $0x8] sm:$0xff]
    %v125 = vld [vmem:[%s3 + $0x10] sm:$0xff]
    %v126 = vld [vmem:[%s3 + $0x18] sm:$0xff]
    %v127 = vld [vmem:[%s3 + $0x20] sm:$0xff]
    %v128 = vld [vmem:[%s3 + $0x28] sm:$0xff]
    %v129 = vld [vmem:[%s3 + $0x30] sm:$0xff]
    %v130 = vld [vmem:[%s3 + $0x38] sm:$0xff]
    %v131 = vld [vmem:[%s3 + $0x40] sm:$0xff]
    %v132 = vld [vmem:[%s3 + $0x48] sm:$0xff]
    %v133 = vld [vmem:[%s3 + $0x50] sm:$0xff]
    %v134 = vld [vmem:[%s3 + $0x58] sm:$0xff]
    %v135 = vld [vmem:[%s3 + $0x60] sm:$0xff]
    %v136 = vld [vmem:[%s3 + $0x68] sm:$0xff]
    %v137 = vld [vmem:[%s3 + $0x70] sm:$0xff]
    %v138 = vld [vmem:[%s3 + $0x78] sm:$0xff]
    %v139 = vld [vmem:[%s4] sm:$0x1]
    %v141 = vlaneseq
    %v142 = vshrl.u32 %v141, 7
    %v143 = vsub.s32 0, %v142
    %v144 = vrot.slane %v139, %v143
    %146 = vmatprep.subr.mxu0 0.0
    %147 = vmatpush1.msra.mxu0 %v123
    %148 = vmatprep.subr.mxu0 0.0
    %149 = vmatpush1.msra.mxu0 %v124
    %150 = vmatprep.subr.mxu0 0.0
    %151 = vmatpush1.msra.mxu0 %v125
    %152 = vmatprep.subr.mxu0 0.0
    %153 = vmatpush1.msra.mxu0 %v126
    %154 = vmatprep.subr.mxu0 0.0
    %155 = vmatpush1.msra.mxu0 %v127
    %156 = vmatprep.subr.mxu0 0.0
    %157 = vmatpush1.msra.mxu0 %v128
    %158 = vmatprep.subr.mxu0 0.0
    %159 = vmatpush1.msra.mxu0 %v129
    %160 = vmatprep.subr.mxu0 0.0
    %161 = vmatpush1.msra.mxu0 %v130
    %162 = vmatprep.subr.mxu0 0.0
    %163 = vmatpush1.msra.mxu0 %v131
    %164 = vmatprep.subr.mxu0 0.0
    %165 = vmatpush1.msra.mxu0 %v132
    %166 = vmatprep.subr.mxu0 0.0
    %167 = vmatpush1.msra.mxu0 %v133
    %168 = vmatprep.subr.mxu0 0.0
    %169 = vmatpush1.msra.mxu0 %v134
    %170 = vmatprep.subr.mxu0 0.0
    %171 = vmatpush1.msra.mxu0 %v135
    %172 = vmatprep.subr.mxu0 0.0
    %173 = vmatpush1.msra.mxu0 %v136
    %174 = vmatprep.subr.mxu0 0.0
    %175 = vmatpush1.msra.mxu0 %v137
    %176 = vmatprep.subr.mxu0 0.0
    %177 = vmatpush1.msra.mxu0 %v138
    %178 = vmatprep.subr.mxu0 0.0
    %179 = vmatpush1.msra.mxu0 0.0
    %180 = vmatprep.subr.mxu0 0.0
    %181 = vmatpush1.msra.mxu0 0.0
    %182 = vmatprep.subr.mxu0 0.0
    %183 = vmatpush1.msra.mxu0 0.0
    %184 = vmatprep.subr.mxu0 0.0
    %185 = vmatpush1.msra.mxu0 0.0
    %186 = vmatprep.subr.mxu0 0.0
    %187 = vmatpush1.msra.mxu0 0.0
    %188 = vmatprep.subr.mxu0 0.0
    %189 = vmatpush1.msra.mxu0 0.0
    %190 = vmatprep.subr.mxu0 0.0
    %191 = vmatpush1.msra.mxu0 0.0
    %192 = vmatprep.subr.mxu0 0.0
    %193 = vmatpush1.msra.mxu0 0.0
    %194 = vmatprep.subr.mxu0 0.0
    %195 = vmatpush1.msra.mxu0 0.0
    %196 = vmatprep.subr.mxu0 0.0
    %197 = vmatpush1.msra.mxu0 0.0
    %198 = vmatprep.subr.mxu0 0.0
    %199 = vmatpush1.msra.mxu0 0.0
    %200 = vmatprep.subr.mxu0 0.0
    %201 = vmatpush1.msra.mxu0 0.0
    %202 = vmatprep.subr.mxu0 0.0
    %203 = vmatpush1.msra.mxu0 0.0
    %204 = vmatprep.subr.mxu0 0.0
    %205 = vmatpush1.msra.mxu0 0.0
    %206 = vmatprep.subr.mxu0 0.0
    %207 = vmatpush1.msra.mxu0 0.0
    %208 = vmatprep.subr.mxu0 0.0
    %209 = vmatpush1.msra.mxu0 0.0
    %210 = vmatprep.mubr.f32.mxu0 0.0
    %211 = vmatmul.mubr.f32.gmra.mrb[0].mxu0 %v122
    %v212 = vpop.f32.mrb[0].mxu0
    %v213 = vadd.f32 %v144, %v212
    %v214 = vpop.f32.mrb[0].mxu0
    %215 = vdwg.mxu0
    %vm216 = vcmask 123904
    %217 = vst.msk [vmem:[#allocation2] sm:$0x3] %vm216, %v213
    // Predicated region
    $region22: #{spk_mlp.1} parent=1 // pred_check
      _
    $region23: #{spk_mlp.1} parent=1 // pred_check_branch
      %219 = sbr.rel (0) target = $region25
    $region24: #{spk_mlp.1} parent=1 // pred_region
      %s221 = ssub.s32 32, 32
      %222 = vsyncadd [#allocation3], %s221
      %s224 = sshll.u32 [#allocation2], 4
      %s225 = int_to_ptr.vmem [resolvable:$true] %s224
      %227 = dma.vmem_to_hbm [thread:$0]  %s225, 32, %s5, [#allocation3]
    $region25: #{spk_mlp.1} parent=1 // pred_fallthru
      _
    // Predicated region
    $region26: #{spk_mlp.1} parent=1 // pred_check
      _
    $region27: #{spk_mlp.1} parent=1 // pred_check_branch
      %229 = sbr.rel (0) target = $region29
    $region28: #{spk_mlp.1} parent=1 // pred_region
      %230 = dma.done [#allocation3], 32
    $region29: #{spk_mlp.1} parent=1 // pred_fallthru
      _
    %231 = vsyncpa [#allocation3], 1

</llo_original>
